<compile_context>
chip_gen: v5e
topology: v5e:2x2
jax: 0.10.0
libtpu: 0.0.40
codegen_flags: <defaults>
</compile_context>

<pallas_src>
import functools

import jax
import jax.numpy as jnp
from jax import lax
from jax.experimental import pallas as pl
from jax.experimental.pallas import tpu as pltpu


def _round_up(x: int, m: int) -> int:
    return ((x + m - 1) // m) * m


def _head_kernel(x_ref, gamma_ref, beta_ref, wt_ref, logits_ref, embed_ref, *,
                 temperature: float, ln_eps: float, matmul_dtype):
    # ---- LayerNorm over the feature dim (matches nn.LayerNorm(num_features)) ----
    x = x_ref[...].astype(jnp.float32)                         # (TB, D)
    mean = jnp.mean(x, axis=-1, keepdims=True)
    xc = x - mean
    var = jnp.mean(xc * xc, axis=-1, keepdims=True)
    y = xc * lax.rsqrt(var + ln_eps) * gamma_ref[...] + beta_ref[...]

    # ---- Tanh activation (EUP) ----
    y = jnp.tanh(y)
    embed_ref[...] = y.astype(embed_ref.dtype)

    # ---- Cosine classifier ----
    # Weight columns already carry 1/||w_c|| (folded in the wrapper prep);
    # temperature and 1/||y|| fold into a single per-row scale (TB scalars).
    # F.normalize(p=2, dim=-1) clamps ||v|| at 1e-12 -> rsqrt(max(sumsq, 1e-24)).
    y_sq = jnp.sum(y * y, axis=-1, keepdims=True)               # (TB, 1)
    row_scale = temperature * lax.rsqrt(jnp.maximum(y_sq, 1e-24))

    # MXU: (TB, D) @ (D, Cp); weight is pre-transposed and pre-cast.
    s = jnp.dot(y.astype(matmul_dtype), wt_ref[...],
                preferred_element_type=jnp.float32)             # (TB, Cp)

    logits_ref[...] = (s * row_scale).astype(logits_ref.dtype)


def prepare_classifier(fc_weight, *, matmul_dtype=jnp.float32):
    """One-time (per weight update) classifier prep.

    Pads/transposes fc_weight (C, D) to (D, Cp), folds in per-class inverse
    L2 norms (F.normalize clamp preserved), and casts to the MXU operand dtype.
    Batch-invariant: hoist out of the per-forward path.
    """
    C, D = fc_weight.shape
    Cp = 128 if C <= 128 else _round_up(C, 256)
    w32 = fc_weight.astype(jnp.float32)
    inv_wn = lax.rsqrt(jnp.maximum(
        jnp.sum(w32 * w32, axis=-1, keepdims=True), 1e-24))      # (C, 1)
    wt = jnp.zeros((D, Cp), jnp.float32).at[:, :C].set((w32 * inv_wn).T)
    return wt.astype(matmul_dtype)


def mynet_head_forward(feats, gamma, beta, wt_scaled, num_classes, *,
                       temperature=16.0, ln_eps=1e-5, block_b=512,
                       embed_dtype=jnp.float32,
                       vmem_limit_bytes=48 * 1024 * 1024):
    """Head forward with a pre-prepared classifier weight (see prepare_classifier).

    feats:      (B, D)   backbone features
    gamma/beta: (D,)     LayerNorm affine params
    wt_scaled:  (D, Cp)  transposed, norm-folded, pre-cast classifier weight
    returns:    (logits (B, num_classes) f32, embed (B, D) embed_dtype)
    """
    B, D = feats.shape
    D2, Cp = wt_scaled.shape
    assert D == D2
    matmul_dtype = wt_scaled.dtype

    # Batch tiling: sublane-aligned, capped at block_b, and capped so that the
    # grid has >= 2 steps once the batch is large enough (v7x megacore sharding).
    B8 = _round_up(B, 8)
    tile_b = min(block_b, _round_up(pl.cdiv(B8, 2), 8), B8)
    Bp = _round_up(B, tile_b)
    grid = (Bp // tile_b,)

    feats_p = feats if Bp == B else jnp.pad(feats, ((0, Bp - B), (0, 0)))

    kernel = functools.partial(_head_kernel,
                               temperature=float(temperature),
                               ln_eps=float(ln_eps),
                               matmul_dtype=matmul_dtype)

    logits_p, embed_p = pl.pallas_call(
        kernel,
        out_shape=(jax.ShapeDtypeStruct((Bp, Cp), jnp.float32),
                   jax.ShapeDtypeStruct((Bp, D), embed_dtype)),
        grid_spec=pltpu.PrefetchScalarGridSpec(
            num_scalar_prefetch=0,
            grid=grid,
            in_specs=[
                pl.BlockSpec((tile_b, D), lambda i: (i, 0)),   # feats tile
                pl.BlockSpec((1, D), lambda i: (0, 0)),        # gamma (resident)
                pl.BlockSpec((1, D), lambda i: (0, 0)),        # beta  (resident)
                pl.BlockSpec((D, Cp), lambda i: (0, 0)),       # scaled W^T (resident)
            ],
            out_specs=(
                pl.BlockSpec((tile_b, Cp), lambda i: (i, 0)),  # logits tile
                pl.BlockSpec((tile_b, D), lambda i: (i, 0)),   # embed tile
            ),
        ),
        compiler_params=pltpu.CompilerParams(
            dimension_semantics=("parallel",),
            vmem_limit_bytes=int(vmem_limit_bytes)),
    )(feats_p, gamma.reshape(1, D), beta.reshape(1, D), wt_scaled)

    return logits_p[:B, :num_classes], embed_p[:B, :]


def mynet_forward(feats, gamma, beta, fc_weight, *,
                  temperature=16.0, ln_eps=1e-5, block_b=512,
                  matmul_dtype=jnp.float32, embed_dtype=jnp.float32):
    """Convenience wrapper: preps the classifier then runs the head kernel.

    For repeated forwards with fixed weights, call prepare_classifier() once and
    use mynet_head_forward() directly to avoid re-paying the weight-side prep.
    """
    C = fc_weight.shape[0]
    wt_scaled = prepare_classifier(fc_weight, matmul_dtype=matmul_dtype)
    return mynet_head_forward(feats, gamma, beta, wt_scaled, C,
                              temperature=temperature, ln_eps=ln_eps,
                              block_b=block_b, embed_dtype=embed_dtype)


def _reference(feats, gamma, beta, fc_weight, temperature=16.0, ln_eps=1e-5):
    x = feats.astype(jnp.float32)
    mean = jnp.mean(x, axis=-1, keepdims=True)
    var = jnp.mean((x - mean) ** 2, axis=-1, keepdims=True)
    y = (x - mean) / jnp.sqrt(var + ln_eps) * gamma + beta
    y = jnp.tanh(y)
    yn = y / jnp.maximum(jnp.linalg.norm(y, axis=-1, keepdims=True), 1e-12)
    wn = fc_weight / jnp.maximum(
        jnp.linalg.norm(fc_weight, axis=-1, keepdims=True), 1e-12)
    return temperature * (yn @ wn.T), y


if __name__ == "__main__":
    # Small synthetic shapes consistent with the module's head:
    #   num_features D = 256, num_classes C = 128, batch B = 8
    B, D, C = 8, 256, 128
    temperature = 16.0

    key = jax.random.PRNGKey(0)
    k1, k2 = jax.random.split(key, 2)

    feats = jax.random.normal(k1, (B, D), dtype=jnp.float32)   # backbone output stand-in
    gamma = jnp.ones((D,), dtype=jnp.float32)                   # nn.LayerNorm default init
    beta = jnp.zeros((D,), dtype=jnp.float32)
    fc_weight = jax.random.normal(k2, (C, D), dtype=jnp.float32) * 0.02  # nn.Linear (no bias)

    # Hoisted weight prep (done once per weight update), then the head kernel.
    wt_scaled = prepare_classifier(fc_weight, matmul_dtype=jnp.float32)
    logits, embed = mynet_head_forward(feats, gamma, beta, wt_scaled, C,
                                       temperature=temperature)
    jax.block_until_ready((logits, embed))

    # Also exercise the convenience wrapper.
    logits2, embed2 = mynet_forward(feats, gamma, beta, fc_weight,
                                    temperature=temperature)
    jax.block_until_ready((logits2, embed2))

    ref_logits, ref_embed = _reference(feats, gamma, beta, fc_weight, temperature)
    assert logits.shape == (B, C) and embed.shape == (B, D)
    assert jnp.allclose(logits, ref_logits, atol=1e-4, rtol=1e-4)
    assert jnp.allclose(embed, ref_embed, atol=1e-5, rtol=1e-5)
    assert jnp.allclose(logits2, ref_logits, atol=1e-4, rtol=1e-4)
    assert jnp.allclose(embed2, ref_embed, atol=1e-5, rtol=1e-5)

    print("KERNEL_OK")
</pallas_src>

<mosaic_0001>
module attributes {stable_mosaic.version = 11 : i64} {
  func.func @_head_kernel(%arg0: i32, %arg1: memref<8x256xf32, #tpu.memory_space<vmem>>, %arg2: memref<1x256xf32, #tpu.memory_space<vmem>>, %arg3: memref<1x256xf32, #tpu.memory_space<vmem>>, %arg4: memref<256x128xf32, #tpu.memory_space<vmem>>, %arg5: memref<8x128xf32, #tpu.memory_space<vmem>>, %arg6: memref<8x256xf32, #tpu.memory_space<vmem>>) attributes {dimension_semantics = [#tpu.dimension_semantics<parallel>], iteration_bounds = array<i64: 1>, scalar_prefetch = 0 : i64, scratch_operands = 0 : i64, tpu.core_type = #tpu.core_type<tc>, window_params = [{transform_indices = @transform_0, window_bounds = array<i64: 8, 256>}, {pipeline_mode = #tpu.pipeline_mode<synchronous>, transform_indices = @transform_1, window_bounds = array<i64: 1, 256>}, {pipeline_mode = #tpu.pipeline_mode<synchronous>, transform_indices = @transform_2, window_bounds = array<i64: 1, 256>}, {pipeline_mode = #tpu.pipeline_mode<synchronous>, transform_indices = @transform_3, window_bounds = array<i64: 256, 128>}, {transform_indices = @transform_4, window_bounds = array<i64: 8, 128>}, {transform_indices = @transform_5, window_bounds = array<i64: 8, 256>}]} {
    %c0 = arith.constant 0 : index
    %c0_0 = arith.constant 0 : index
    %0 = vector.load %arg1[%c0, %c0_0] : memref<8x256xf32, #tpu.memory_space<vmem>>, vector<8x256xf32>
    %cst = arith.constant dense<0.000000e+00> : vector<8xf32>
    %1 = vector.multi_reduction <add>, %0, %cst [1] : vector<8x256xf32> to vector<8xf32>
    %2 = vector.shape_cast %1 : vector<8xf32> to vector<8x1xf32>
    %cst_1 = arith.constant 2.560000e+02 : f32
    %3 = vector.broadcast %cst_1 : f32 to vector<8x1xf32>
    %4 = arith.divf %2, %3 : vector<8x1xf32>
    %5 = vector.broadcast %4 : vector<8x1xf32> to vector<8x256xf32>
    %6 = arith.subf %0, %5 : vector<8x256xf32>
    %7 = arith.mulf %6, %6 : vector<8x256xf32>
    %cst_2 = arith.constant dense<0.000000e+00> : vector<8xf32>
    %8 = vector.multi_reduction <add>, %7, %cst_2 [1] : vector<8x256xf32> to vector<8xf32>
    %9 = vector.shape_cast %8 : vector<8xf32> to vector<8x1xf32>
    %cst_3 = arith.constant 2.560000e+02 : f32
    %10 = vector.broadcast %cst_3 : f32 to vector<8x1xf32>
    %11 = arith.divf %9, %10 : vector<8x1xf32>
    %cst_4 = arith.constant 9.99999974E-6 : f32
    %12 = vector.broadcast %cst_4 : f32 to vector<8x1xf32>
    %13 = arith.addf %11, %12 : vector<8x1xf32>
    %14 = math.rsqrt %13 : vector<8x1xf32>
    %15 = vector.broadcast %14 : vector<8x1xf32> to vector<8x256xf32>
    %16 = arith.mulf %6, %15 : vector<8x256xf32>
    %c0_5 = arith.constant 0 : index
    %c0_6 = arith.constant 0 : index
    %17 = vector.load %arg2[%c0_5, %c0_6] : memref<1x256xf32, #tpu.memory_space<vmem>>, vector<1x256xf32>
    %18 = vector.broadcast %17 : vector<1x256xf32> to vector<8x256xf32>
    %19 = arith.mulf %16, %18 : vector<8x256xf32>
    %c0_7 = arith.constant 0 : index
    %c0_8 = arith.constant 0 : index
    %20 = vector.load %arg3[%c0_7, %c0_8] : memref<1x256xf32, #tpu.memory_space<vmem>>, vector<1x256xf32>
    %21 = vector.broadcast %20 : vector<1x256xf32> to vector<8x256xf32>
    %22 = arith.addf %19, %21 : vector<8x256xf32>
    %23 = math.tanh %22 : vector<8x256xf32>
    %c0_9 = arith.constant 0 : index
    %c0_10 = arith.constant 0 : index
    %24 = vector.load %arg6[%c0_9, %c0_10] : memref<8x256xf32, #tpu.memory_space<vmem>>, vector<8x256xf32>
    tpu.vector_store %arg6[%c0_9, %c0_10], %23 {strides = array<i32>} : memref<8x256xf32, #tpu.memory_space<vmem>>, vector<8x256xf32>,
    %25 = arith.mulf %23, %23 : vector<8x256xf32>
    %cst_11 = arith.constant dense<0.000000e+00> : vector<8xf32>
    %26 = vector.multi_reduction <add>, %25, %cst_11 [1] : vector<8x256xf32> to vector<8xf32>
    %27 = vector.shape_cast %26 : vector<8xf32> to vector<8x1xf32>
    %cst_12 = arith.constant 1.000000e-24 : f32
    %28 = vector.broadcast %cst_12 : f32 to vector<8x1xf32>
    %29 = arith.maximumf %27, %28 : vector<8x1xf32>
    %30 = math.rsqrt %29 : vector<8x1xf32>
    %cst_13 = arith.constant 1.600000e+01 : f32
    %31 = vector.broadcast %cst_13 : f32 to vector<8x1xf32>
    %32 = arith.mulf %31, %30 : vector<8x1xf32>
    %c0_14 = arith.constant 0 : index
    %c0_15 = arith.constant 0 : index
    %33 = vector.load %arg4[%c0_14, %c0_15] : memref<256x128xf32, #tpu.memory_space<vmem>>, vector<256x128xf32>
    %cst_16 = arith.constant dense<0.000000e+00> : vector<8x128xf32>
    %34 = tpu.matmul %23, %33, %cst_16 {dimension_numbers = #tpu.dot_dimension_numbers<[1], [0], [0], [1], [0, 0, 1, 1], [], []>} : vector<8x256xf32>, vector<256x128xf32>, vector<8x128xf32> -> vector<8x128xf32>
    %35 = vector.broadcast %32 : vector<8x1xf32> to vector<8x128xf32>
    %36 = arith.mulf %34, %35 : vector<8x128xf32>
    %c0_17 = arith.constant 0 : index
    %c0_18 = arith.constant 0 : index
    %37 = vector.load %arg5[%c0_17, %c0_18] : memref<8x128xf32, #tpu.memory_space<vmem>>, vector<8x128xf32>
    tpu.vector_store %arg5[%c0_17, %c0_18], %36 {strides = array<i32>} : memref<8x128xf32, #tpu.memory_space<vmem>>, vector<8x128xf32>,
    return
  }
  func.func @transform_0(%arg0: i32) -> (i32, i32) {
    %c0_i32 = arith.constant 0 : i32
    %c0_i32_0 = arith.constant 0 : i32
    return %arg0, %c0_i32 : i32, i32
  }
  func.func @transform_1(%arg0: i32) -> (i32, i32) {
    %c0_i32 = arith.constant 0 : i32
    %c0_i32_0 = arith.constant 0 : i32
    %c0_i32_1 = arith.constant 0 : i32
    return %c0_i32, %c0_i32_0 : i32, i32
  }
  func.func @transform_2(%arg0: i32) -> (i32, i32) {
    %c0_i32 = arith.constant 0 : i32
    %c0_i32_0 = arith.constant 0 : i32
    %c0_i32_1 = arith.constant 0 : i32
    return %c0_i32, %c0_i32_0 : i32, i32
  }
  func.func @transform_3(%arg0: i32) -> (i32, i32) {
    %c0_i32 = arith.constant 0 : i32
    %c0_i32_0 = arith.constant 0 : i32
    %c0_i32_1 = arith.constant 0 : i32
    return %c0_i32, %c0_i32_0 : i32, i32
  }
  func.func @transform_4(%arg0: i32) -> (i32, i32) {
    %c0_i32 = arith.constant 0 : i32
    %c0_i32_0 = arith.constant 0 : i32
    return %arg0, %c0_i32 : i32, i32
  }
  func.func @transform_5(%arg0: i32) -> (i32, i32) {
    %c0_i32 = arith.constant 0 : i32
    %c0_i32_0 = arith.constant 0 : i32
    return %arg0, %c0_i32 : i32, i32
  }
}

</mosaic_0001>

<llo_original>
// kernel: tpu_custom_call.1
$region0: #{tpu_custom_call.1}
  #allocation0 [shape = 'u32[]', space=smem, size = 0x4, offset = 0x4, fixed_abs, tag = 'smem constant byte address 0x4 - core index']
  #allocation1 [shape = 'u32[72,128]{1,0:T(1,128)}', space=vmem, size = 0x9000, scoped, tag = 'internal scratch']
  %s0 = inlined_call_operand.hbm [shape: f32[8,256], index: 0, kind: input, shape index: {}]
  %s1 = inlined_call_operand.hbm [shape: f32[1,256], index: 1, kind: input, shape index: {}]
  %s2 = inlined_call_operand.hbm [shape: f32[1,256], index: 2, kind: input, shape index: {}]
  %s3 = inlined_call_operand.hbm [shape: f32[256,128], index: 3, kind: input, shape index: {}]
  %s4 = inlined_call_operand.hbm [shape: f32[8,128], index: 4, kind: output, shape index: {0}]
  %s5 = inlined_call_operand.hbm [shape: f32[8,256], index: 5, kind: output, shape index: {1}]
  %6 = xla_tuple %s4, %s5
  %s7 = sld [smem:[#allocation0]]
  $region50: #{tpu_custom_call.1} parent=0
    _
  %s9 = ssub.s32 1, %s7
  %s10 = scalar_select 0, %s9, %s7
  $region1: #{tpu_custom_call.1} parent=0
    #allocation2 [shape = 'u8[8192]{0}', space=vmem, size = 0x2000, scoped, tag = 'input window, operand 0, single buffered']
    #allocation3 [shape = 's32[1]{0}', space=sflag, size = 0x4, scoped, tag = 'scoped memory for tpu_custom_call.1']
    #allocation4 [shape = 's32[1]{0}', space=sflag, size = 0x4, scoped, tag = 'scoped memory for tpu_custom_call.1']
    #allocation5 [shape = 'u8[1024]{0}', space=vmem, size = 0x400, scoped, tag = 'input window, operand 1, single buffered']
    #allocation6 [shape = 's32[1]{0}', space=sflag, size = 0x4, scoped, tag = 'scoped memory for tpu_custom_call.1']
    #allocation7 [shape = 'u8[1024]{0}', space=vmem, size = 0x400, scoped, tag = 'input window, operand 2, single buffered']
    #allocation8 [shape = 'u8[131072]{0}', space=vmem, size = 0x20000, scoped, tag = 'input window, operand 3, single buffered']
    #allocation9 [shape = 's32[1]{0}', space=sflag, size = 0x4, scoped, tag = 'scoped memory for tpu_custom_call.1']
    #allocation10 [shape = 'u8[4096]{0}', space=vmem, size = 0x1000, scoped, tag = 'output window, operand 0, single buffered']
    #allocation11 [shape = 'u8[8192]{0}', space=vmem, size = 0x2000, scoped, tag = 'output window, operand 1, single buffered']
    #allocation12 [shape = 's32[1]{0}', space=sflag, size = 0x4, scoped, tag = 'scoped memory for tpu_custom_call.1']
    %11 = vsyncpa [#allocation3], 0
    %12 = vsyncpa [#allocation6], 0
    %13 = vsyncpa [#allocation9], 0
    %14 = vsyncpa [#allocation4], 0
    %15 = vsyncpa [#allocation12], 0
    // Predicated region
    $region2: #{tpu_custom_call.1} parent=1 // pred_check
      _
    $region3: #{tpu_custom_call.1} parent=1 // pred_check_branch
      %17 = sbr.rel (0) target = $region5
    $region4: #{tpu_custom_call.1} parent=1 // pred_region
      %19 = vsyncadd [#allocation3], 0
      %s21 = sshll.u32 %s0, 4
      %s22 = int_to_ptr.hbm [resolvable:$true] %s21
      %s23 = sshll.u32 [#allocation2], 4
      %s24 = int_to_ptr.vmem [resolvable:$true] %s23
      %26 = dma.hbm_to_vmem [thread:$0]  %s22, 256, %s24, [#allocation3]
    $region5: #{tpu_custom_call.1} parent=1 // pred_fallthru
      _
    // Predicated region
    $region6: #{tpu_custom_call.1} parent=1 // pred_check
      _
    $region7: #{tpu_custom_call.1} parent=1 // pred_check_branch
      %28 = sbr.rel (0) target = $region9
    $region8: #{tpu_custom_call.1} parent=1 // pred_region
      %30 = vsyncadd [#allocation6], 0
      %s32 = sshll.u32 %s1, 4
      %s33 = int_to_ptr.hbm [resolvable:$true] %s32
      %s34 = sshll.u32 [#allocation5], 4
      %s35 = int_to_ptr.vmem [resolvable:$true] %s34
      %37 = dma.hbm_to_vmem [thread:$0]  %s33, 32, %s35, [#allocation6]
    $region9: #{tpu_custom_call.1} parent=1 // pred_fallthru
      _
    // Predicated region
    $region10: #{tpu_custom_call.1} parent=1 // pred_check
      _
    $region11: #{tpu_custom_call.1} parent=1 // pred_check_branch
      %39 = sbr.rel (0) target = $region13
    $region12: #{tpu_custom_call.1} parent=1 // pred_region
      %41 = vsyncadd [#allocation6], 0
      %s43 = sshll.u32 %s2, 4
      %s44 = int_to_ptr.hbm [resolvable:$true] %s43
      %s45 = sshll.u32 [#allocation7], 4
      %s46 = int_to_ptr.vmem [resolvable:$true] %s45
      %48 = dma.hbm_to_vmem [thread:$0]  %s44, 32, %s46, [#allocation6]
    $region13: #{tpu_custom_call.1} parent=1 // pred_fallthru
      _
    // Predicated region
    $region14: #{tpu_custom_call.1} parent=1 // pred_check
      _
    $region15: #{tpu_custom_call.1} parent=1 // pred_check_branch
      %50 = sbr.rel (0) target = $region17
    $region16: #{tpu_custom_call.1} parent=1 // pred_region
      %52 = vsyncadd [#allocation9], 0
      %s53 = sshll.u32 %s3, 4
      %s54 = int_to_ptr.hbm [resolvable:$true] %s53
      %s55 = sshll.u32 [#allocation8], 4
      %s56 = int_to_ptr.vmem [resolvable:$true] %s55
      %61 = dma.hbm_to_vmem [thread:$0]  %s54, 4096, %s56, [#allocation9], 128, 128, 8
    $region17: #{tpu_custom_call.1} parent=1 // pred_fallthru
      _
    // Predicated region
    $region18: #{tpu_custom_call.1} parent=1 // pred_check
      _
    $region19: #{tpu_custom_call.1} parent=1 // pred_check_branch
      %63 = sbr.rel (0) target = $region21
    $region20: #{tpu_custom_call.1} parent=1 // pred_region
      %65 = dma.done [#allocation3], 256
    $region21: #{tpu_custom_call.1} parent=1 // pred_fallthru
      _
    // Predicated region
    $region22: #{tpu_custom_call.1} parent=1 // pred_check
      _
    $region23: #{tpu_custom_call.1} parent=1 // pred_check_branch
      %67 = sbr.rel (0) target = $region25
    $region24: #{tpu_custom_call.1} parent=1 // pred_region
      %69 = dma.done [#allocation6], 32
    $region25: #{tpu_custom_call.1} parent=1 // pred_fallthru
      _
    // Predicated region
    $region26: #{tpu_custom_call.1} parent=1 // pred_check
      _
    $region27: #{tpu_custom_call.1} parent=1 // pred_check_branch
      %71 = sbr.rel (0) target = $region29
    $region28: #{tpu_custom_call.1} parent=1 // pred_region
      %73 = dma.done [#allocation6], 32
    $region29: #{tpu_custom_call.1} parent=1 // pred_fallthru
      _
    // Predicated region
    $region30: #{tpu_custom_call.1} parent=1 // pred_check
      _
    $region31: #{tpu_custom_call.1} parent=1 // pred_check_branch
      %75 = sbr.rel (0) target = $region33
    $region32: #{tpu_custom_call.1} parent=1 // pred_region
      %77 = dma.done [#allocation9], 4096
    $region33: #{tpu_custom_call.1} parent=1 // pred_fallthru
      _
    %v78 = vld [vmem:[#allocation2] sm:$0xff]
    %v79 = vld [vmem:[#allocation2 + $0x8] sm:$0xff]
    %v80 = vadd.f32 %v78, %v79
    %81 = vadd.xlane.f32.xlu0 %v80
    %v82 = vpop.xlane.xlu0 %81
    %v83 = vrcp.pop 256.0
    %v84 = vmul.f32 256.0, %v83
    %v85 = vsub.f32 1.0, %v84
    %v86 = vmul.f32 %v83, %v85
    %v87 = vadd.f32 %v83, %v86
    %vm88 = vweird.f32 %v83
    %v89 = vsel %vm88, %v83, %v87
    %v90 = vmul.f32 %v82, %v89
    %v91 = vsub.f32 %v78, %v90
    %v92 = vsub.f32 %v79, %v90
    %v93 = vmul.f32 %v91, %v91
    %v94 = vmul.f32 %v92, %v92
    %v95 = vadd.f32 %v93, %v94
    %96 = vadd.xlane.f32.xlu0 %v95
    %v97 = vpop.xlane.xlu0 %96
    %v98 = vmul.f32 %v97, %v89
    %v99 = vadd.f32 %v98, 1e-05
    %v100 = vrsqrt.pop %v99
    %v101 = vmul.f32 %v100, %v99
    %v102 = vmul.f32 %v101, %v100
    %v103 = vmul.f32 0.5, %v102
    %v104 = vsub.f32 1.5, %v103
    %v105 = vmul.f32 %v100, %v104
    %vm106 = vweird.f32 %v99
    %vm107 = vweird.f32 %v100
    %vm108 = vmor %vm106, %vm107
    %v109 = vsel %vm108, %v100, %v105
    %v110 = vmul.f32 %v91, %v109
    %v111 = vmul.f32 %v92, %v109
    %v112 = vld [vmem:[#allocation5] sm:$0x3]
    %v114 = vperm.slane %v112, 0
    %v115 = vperm.slane %v112, 1
    %v118 = vmul.f32 %v110, %v114
    %v119 = vmul.f32 %v111, %v115
    %v120 = vld [vmem:[#allocation7] sm:$0x3]
    %v122 = vperm.slane %v120, 0
    %v123 = vperm.slane %v120, 1
    %v126 = vadd.f32 %v118, %v122
    %v127 = vadd.f32 %v119, %v123
    %v128 = vtanh.pop %v126
    %v129 = vtanh.pop %v127
    %130 = vst [vmem:[#allocation11] sm:$0xff] %v128
    %131 = vst [vmem:[#allocation11 + $0x8] sm:$0xff] %v129
    %v132 = vmul.f32 %v128, %v128
    %v133 = vmul.f32 %v129, %v129
    %v134 = vadd.f32 %v132, %v133
    %135 = vadd.xlane.f32.xlu0 %v134
    %v136 = vpop.xlane.xlu0 %135
    %v137 = vmax.f32 %v136, 1e-24
    %v138 = vrsqrt.pop %v137
    %v139 = vmul.f32 %v138, %v137
    %v140 = vmul.f32 %v139, %v138
    %v141 = vmul.f32 0.5, %v140
    %v142 = vsub.f32 1.5, %v141
    %v143 = vmul.f32 %v138, %v142
    %vm144 = vweird.f32 %v137
    %vm145 = vweird.f32 %v138
    %vm146 = vmor %vm144, %vm145
    %v147 = vsel %vm146, %v138, %v143
    %v148 = vmul.f32 %v147, 16.0
    %v149 = vld [vmem:[#allocation8] sm:$0xff]
    %v150 = vld [vmem:[#allocation8 + $0x8] sm:$0xff]
    %v151 = vld [vmem:[#allocation8 + $0x10] sm:$0xff]
    %v152 = vld [vmem:[#allocation8 + $0x18] sm:$0xff]
    %v153 = vld [vmem:[#allocation8 + $0x20] sm:$0xff]
    %v154 = vld [vmem:[#allocation8 + $0x28] sm:$0xff]
    %v155 = vld [vmem:[#allocation8 + $0x30] sm:$0xff]
    %v156 = vld [vmem:[#allocation8 + $0x38] sm:$0xff]
    %v157 = vld [vmem:[#allocation8 + $0x40] sm:$0xff]
    %v158 = vld [vmem:[#allocation8 + $0x48] sm:$0xff]
    %v159 = vld [vmem:[#allocation8 + $0x50] sm:$0xff]
    %v160 = vld [vmem:[#allocation8 + $0x58] sm:$0xff]
    %v161 = vld [vmem:[#allocation8 + $0x60] sm:$0xff]
    %v162 = vld [vmem:[#allocation8 + $0x68] sm:$0xff]
    %v163 = vld [vmem:[#allocation8 + $0x70] sm:$0xff]
    %v164 = vld [vmem:[#allocation8 + $0x78] sm:$0xff]
    %v165 = vld [vmem:[#allocation8 + $0x80] sm:$0xff]
    %v166 = vld [vmem:[#allocation8 + $0x88] sm:$0xff]
    %v167 = vld [vmem:[#allocation8 + $0x90] sm:$0xff]
    %v168 = vld [vmem:[#allocation8 + $0x98] sm:$0xff]
    %v169 = vld [vmem:[#allocation8 + $0xa0] sm:$0xff]
    %v170 = vld [vmem:[#allocation8 + $0xa8] sm:$0xff]
    %v171 = vld [vmem:[#allocation8 + $0xb0] sm:$0xff]
    %v172 = vld [vmem:[#allocation8 + $0xb8] sm:$0xff]
    %v173 = vld [vmem:[#allocation8 + $0xc0] sm:$0xff]
    %v174 = vld [vmem:[#allocation8 + $0xc8] sm:$0xff]
    %v175 = vld [vmem:[#allocation8 + $0xd0] sm:$0xff]
    %v176 = vld [vmem:[#allocation8 + $0xd8] sm:$0xff]
    %v177 = vld [vmem:[#allocation8 + $0xe0] sm:$0xff]
    %v178 = vld [vmem:[#allocation8 + $0xe8] sm:$0xff]
    %v179 = vld [vmem:[#allocation8 + $0xf0] sm:$0xff]
    %v180 = vld [vmem:[#allocation8 + $0xf8] sm:$0xff]
    %181 = vmatpush.msra.mxu0 %v164
    %182 = vmatpush.msra.mxu0 %v163
    %183 = vmatpush.msra.mxu0 %v162
    %184 = vmatpush.msra.mxu0 %v161
    %185 = vmatpush.msra.mxu0 %v160
    %186 = vmatpush.msra.mxu0 %v159
    %187 = vmatpush.msra.mxu0 %v158
    %188 = vmatpush.msra.mxu0 %v157
    %189 = vmatpush.msra.mxu0 %v156
    %190 = vmatpush.msra.mxu0 %v155
    %191 = vmatpush.msra.mxu0 %v154
    %192 = vmatpush.msra.mxu0 %v153
    %193 = vmatpush.msra.mxu0 %v152
    %194 = vmatpush.msra.mxu0 %v151
    %195 = vmatpush.msra.mxu0 %v150
    %196 = vmatpush.msra.mxu0 %v149
    %197 = vmatmul.f32.gmra.mxu0 %v128
    %v198 = vpop.f32.mrf.mxu0
    %v199 = vadd.f32 0.0, %v198
    %200 = vdwg.mxu0
    %201 = vmatpush.msra.mxu0 %v180
    %202 = vmatpush.msra.mxu0 %v179
    %203 = vmatpush.msra.mxu0 %v178
    %204 = vmatpush.msra.mxu0 %v177
    %205 = vmatpush.msra.mxu0 %v176
    %206 = vmatpush.msra.mxu0 %v175
    %207 = vmatpush.msra.mxu0 %v174
    %208 = vmatpush.msra.mxu0 %v173
    %209 = vmatpush.msra.mxu0 %v172
    %210 = vmatpush.msra.mxu0 %v171
    %211 = vmatpush.msra.mxu0 %v170
    %212 = vmatpush.msra.mxu0 %v169
    %213 = vmatpush.msra.mxu0 %v168
    %214 = vmatpush.msra.mxu0 %v167
    %215 = vmatpush.msra.mxu0 %v166
    %216 = vmatpush.msra.mxu0 %v165
    %217 = vmatmul.f32.gmra.mxu0 %v129
    %v218 = vpop.f32.mrf.mxu0
    %v219 = vadd.f32 %v199, %v218
    %220 = vdwg.mxu0
    %v221 = vmul.f32 %v219, %v148
    %222 = vst [vmem:[#allocation10] sm:$0xff] %v221
    // Predicated region
    $region34: #{tpu_custom_call.1} parent=1 // pred_check
      _
    $region35: #{tpu_custom_call.1} parent=1 // pred_check_branch
      %224 = sbr.rel (0) target = $region37
    $region36: #{tpu_custom_call.1} parent=1 // pred_region
      %226 = vsyncadd [#allocation4], 0
      %s228 = sshll.u32 [#allocation10], 4
      %s229 = int_to_ptr.vmem [resolvable:$true] %s228
      %s230 = sshll.u32 %s4, 4
      %s231 = int_to_ptr.hbm [resolvable:$true] %s230
      %233 = dma.vmem_to_hbm [thread:$0]  %s229, 128, %s231, [#allocation4]
    $region37: #{tpu_custom_call.1} parent=1 // pred_fallthru
      _
    // Predicated region
    $region38: #{tpu_custom_call.1} parent=1 // pred_check
      _
    $region39: #{tpu_custom_call.1} parent=1 // pred_check_branch
      %235 = sbr.rel (0) target = $region41
    $region40: #{tpu_custom_call.1} parent=1 // pred_region
      %237 = vsyncadd [#allocation12], 0
      %s239 = sshll.u32 [#allocation11], 4
      %s240 = int_to_ptr.vmem [resolvable:$true] %s239
      %s241 = sshll.u32 %s5, 4
      %s242 = int_to_ptr.hbm [resolvable:$true] %s241
      %244 = dma.vmem_to_hbm [thread:$0]  %s240, 256, %s242, [#allocation12]
    $region41: #{tpu_custom_call.1} parent=1 // pred_fallthru
      _
    // Predicated region
    $region42: #{tpu_custom_call.1} parent=1 // pred_check
      _
    $region43: #{tpu_custom_call.1} parent=1 // pred_check_branch
      %246 = sbr.rel (0) target = $region45
    $region44: #{tpu_custom_call.1} parent=1 // pred_region
      %248 = dma.done [#allocation4], 128
    $region45: #{tpu_custom_call.1} parent=1 // pred_fallthru
      _
    // Predicated region
    $region46: #{tpu_custom_call.1} parent=1 // pred_check
      _
    $region47: #{tpu_custom_call.1} parent=1 // pred_check_branch
      %250 = sbr.rel (0) target = $region49
    $region48: #{tpu_custom_call.1} parent=1 // pred_region
      %252 = dma.done [#allocation12], 256
    $region49: #{tpu_custom_call.1} parent=1 // pred_fallthru
      _
    %253 = vsyncpa [#allocation3], 1
    %254 = vsyncpa [#allocation6], 1
    %255 = vsyncpa [#allocation9], 1
    %256 = vsyncpa [#allocation4], 1
    %257 = vsyncpa [#allocation12], 1

</llo_original>
